<compile_context>
chip_gen: v7x
topology: tpu7x:2x2x1
jax: 0.10.0
libtpu: 0.0.40
codegen_flags: <defaults>
</compile_context>

<pallas_src>
import functools

import jax
import jax.numpy as jnp
from jax import lax
from jax.experimental import pallas as pl
from jax.experimental.pallas import tpu as pltpu

_EPS = 1e-5
_MIB = 1024 * 1024


def _round_up(x: int, m: int) -> int:
    return ((x + m - 1) // m) * m


def _sublane_pack(dtype) -> int:
    # Sub-32-bit dtypes pack along sublanes: f32 -> 8, bf16 -> 16, int8 -> 32.
    return max(8, 32 // jnp.dtype(dtype).itemsize)


def _vmem_budget(itemsize: int):
    """Return (vmem_limit_bytes, per-buffer tile byte budget) for this chip."""
    try:
        vmem_cap = int(pltpu.get_tpu_info().vmem_capacity_bytes)
    except Exception:  # conservative fallback if the query is unavailable
        vmem_cap = 64 * _MIB
    # Leave ~1/4 of physical VMEM for compiler-internal scratch; never ask for
    # more than 96 MiB even on 128 MiB parts.  (v7x: 48 MiB, v5e/v6e: 96 MiB.)
    vmem_limit = max(32 * _MIB, min((vmem_cap * 3) // 4, 96 * _MIB))
    # Live VMEM ~= 4 double-buffered pipeline slabs (in + out) plus ~3
    # tile-sized f32 temporaries inside the kernel, plus slack:
    #   (4 + 3 * (4 / itemsize) + 2) tiles  ==  (6 + 12 // itemsize) tiles.
    # Cap at 6 MiB: beyond that the ~0.35 us per-step overhead is already
    # <10% of the HBM stream time on every generation.
    tile_bytes = min(6 * _MIB, vmem_limit // (6 + 12 // itemsize))
    return vmem_limit, tile_bytes


# ---------------------------------------------------------------------------
# Path 1 (default): full spatial plane resident in VMEM.
#   One HBM read + one HBM write per element; exact two-pass variance.
# ---------------------------------------------------------------------------
def _resident_kernel(img_ref, factor_ref, bias_ref, out_ref, *, tm):
    i = pl.program_id(0)
    start = i * tm
    if tm % 8 == 0:
        start = pl.multiple_of(start, 8)          # sublane-aligned slice
    f = factor_ref[pl.ds(start, tm), :]           # (tm, 1) f32, resident slab
    b = bias_ref[pl.ds(start, tm), :]

    xf = img_ref[...].astype(jnp.float32)         # (tm, plane)
    plane = xf.shape[-1]
    inv_p = jnp.float32(1.0 / plane)

    mean = jnp.sum(xf, axis=-1, keepdims=True) * inv_p
    d = xf - mean                                  # exact two-pass variance
    var = jnp.sum(d * d, axis=-1, keepdims=True) * inv_p
    inv_std = lax.rsqrt(var + jnp.float32(_EPS))

    scale = f * inv_std
    shift = b - mean * scale
    out_ref[...] = (xf * scale + shift).astype(out_ref.dtype)


def _adain_resident(img2d, factor, bias, rows, plane, pack, tile_bytes,
                    vmem_limit):
    itemsize = jnp.dtype(img2d.dtype).itemsize
    bytes_per_row = max(plane * itemsize, 1)

    tm_budget = max(pack, (tile_bytes // bytes_per_row) // pack * pack)
    if rows <= tm_budget:
        tm, grid_r = rows, 1                       # single full-dim block
    else:
        grid_r = pl.cdiv(rows, tm_budget)
        # Balance row blocks (multiple of the sublane pack) within the budget.
        tm = min(tm_budget, _round_up(pl.cdiv(rows, grid_r), pack))
        grid_r = pl.cdiv(rows, tm)

    rows_pad = grid_r * tm
    if rows_pad != rows:
        # Only the tiny factor/bias tables are padded (zeros keep padded rows
        # harmless); the image itself is streamed unpadded and the ragged last
        # row-block is masked by Pallas.
        factor = jnp.pad(factor, ((0, rows_pad - rows), (0, 0)))
        bias = jnp.pad(bias, ((0, rows_pad - rows), (0, 0)))

    grid_spec = pltpu.PrefetchScalarGridSpec(
        num_scalar_prefetch=0,
        grid=(grid_r,),
        in_specs=[
            pl.BlockSpec((tm, plane), lambda i: (i, 0)),      # image rows
            pl.BlockSpec((rows_pad, 1), lambda i: (0, 0)),    # factor (resident)
            pl.BlockSpec((rows_pad, 1), lambda i: (0, 0)),    # bias   (resident)
        ],
        out_specs=pl.BlockSpec((tm, plane), lambda i: (i, 0)),
    )
    return pl.pallas_call(
        functools.partial(_resident_kernel, tm=tm),
        out_shape=jax.ShapeDtypeStruct((rows, plane), img2d.dtype),
        grid_spec=grid_spec,
        compiler_params=pltpu.CompilerParams(
            dimension_semantics=(pltpu.PARALLEL,),
            vmem_limit_bytes=vmem_limit,
        ),
    )(img2d, factor, bias)


# ---------------------------------------------------------------------------
# Path 2 (fallback for large H*W): plane-tiled two-phase kernel.
#   Phase 0 accumulates shifted moments over plane blocks, phase 1 applies
#   the affine normalization.  Two HBM reads + one write per element.
# ---------------------------------------------------------------------------
def _tiled_kernel(img_ref, factor_ref, bias_ref, out_ref,
                  mean0_ref, s1_ref, s2_ref, scale_ref, shift_ref,
                  *, plane, tp):
    ph = pl.program_id(1)                          # 0 = stats, 1 = apply
    j = pl.program_id(2)                           # plane block
    xf = img_ref[...].astype(jnp.float32)          # (tm, tp)

    @pl.when(ph == 0)
    def _stats():
        @pl.when(j == 0)
        def _init():
            # Reference mean from the (always full) first plane block; the
            # running sums below are deviations from it ("shifted" one-pass
            # moments), which avoids catastrophic cancellation.
            mean0_ref[...] = jnp.sum(xf, axis=-1, keepdims=True) * jnp.float32(1.0 / tp)
            s1_ref[...] = jnp.zeros_like(s1_ref)
            s2_ref[...] = jnp.zeros_like(s2_ref)

        col = lax.broadcasted_iota(jnp.int32, xf.shape, 1)
        valid = col < (plane - j * tp)             # mask ragged last plane block
        d = jnp.where(valid, xf - mean0_ref[...], 0.0)
        s1_ref[...] += jnp.sum(d, axis=-1, keepdims=True)
        s2_ref[...] += jnp.sum(d * d, axis=-1, keepdims=True)

    @pl.when(ph == 1)
    def _apply():
        @pl.when(j == 0)
        def _finalize():
            inv_p = jnp.float32(1.0 / plane)
            dm = s1_ref[...] * inv_p
            mean = mean0_ref[...] + dm
            var = jnp.maximum(s2_ref[...] * inv_p - dm * dm, 0.0)
            inv_std = lax.rsqrt(var + jnp.float32(_EPS))
            scale_ref[...] = factor_ref[...] * inv_std
            shift_ref[...] = bias_ref[...] - mean * scale_ref[...]

        out_ref[...] = (xf * scale_ref[...] + shift_ref[...]).astype(out_ref.dtype)


def _adain_tiled(img2d, factor, bias, rows, plane, pack, tile_bytes,
                 vmem_limit, tp=None):
    itemsize = jnp.dtype(img2d.dtype).itemsize
    tm = pack
    if tp is None:
        tp = max(128, (tile_bytes // (tm * itemsize)) // 128 * 128)
    assert tp % 128 == 0
    tp = min(tp, _round_up(plane, 128))
    grid_r = pl.cdiv(rows, tm)
    grid_j = pl.cdiv(plane, tp)

    grid_spec = pltpu.PrefetchScalarGridSpec(
        num_scalar_prefetch=0,
        grid=(grid_r, 2, grid_j),
        in_specs=[
            pl.BlockSpec((tm, tp), lambda r, ph, j: (r, j)),
            pl.BlockSpec((tm, 1), lambda r, ph, j: (r, 0)),
            pl.BlockSpec((tm, 1), lambda r, ph, j: (r, 0)),
        ],
        # During the stats pass (ph == 0) the output block index is pinned to
        # (r, 0), so no write-back happens until the apply pass has filled it.
        out_specs=pl.BlockSpec((tm, tp), lambda r, ph, j: (r, j * ph)),
        scratch_shapes=[pltpu.VMEM((tm, 1), jnp.float32)] * 5,
    )
    return pl.pallas_call(
        functools.partial(_tiled_kernel, plane=plane, tp=tp),
        out_shape=jax.ShapeDtypeStruct((rows, plane), img2d.dtype),
        grid_spec=grid_spec,
        compiler_params=pltpu.CompilerParams(
            dimension_semantics=(pltpu.PARALLEL, pltpu.ARBITRARY, pltpu.ARBITRARY),
            vmem_limit_bytes=vmem_limit,
        ),
    )(img2d, factor, bias)


# ---------------------------------------------------------------------------
# Public wrapper.
# ---------------------------------------------------------------------------
def adain(image: jax.Array, style: jax.Array, *,
          _force_plane_tiled: bool = False,
          _plane_tile: int | None = None,
          _max_rows_per_block: int | None = None) -> jax.Array:
    """image: (N, C, H, W); style: (N, 2*C). Returns (N, C, H, W)."""
    N, C, H, W = image.shape
    assert style.shape == (N, 2 * C), f"style must be (N, 2C), got {style.shape}"
    rows, plane = N * C, H * W

    # Layout plumbing (pure reshape): lane-dense (rows, plane) slab.
    img2d = image.reshape(rows, plane)
    factor = style[:, :C].reshape(rows, 1).astype(jnp.float32)
    bias = style[:, C:].reshape(rows, 1).astype(jnp.float32)

    itemsize = jnp.dtype(image.dtype).itemsize
    pack = _sublane_pack(image.dtype)
    vmem_limit, tile_bytes = _vmem_budget(itemsize)
    if _max_rows_per_block is not None:            # test hook
        tile_bytes = min(tile_bytes, _max_rows_per_block * plane * itemsize)

    # Resident path iff one pack-rows x full-plane slab fits the per-buffer
    # budget; otherwise tile the plane (stats pass + apply pass).
    resident_ok = pack * plane * itemsize <= max(tile_bytes, vmem_limit // 9)
    if _force_plane_tiled or not resident_ok:
        out2d = _adain_tiled(img2d, factor, bias, rows, plane, pack,
                             tile_bytes, vmem_limit, tp=_plane_tile)
    else:
        out2d = _adain_resident(img2d, factor, bias, rows, plane, pack,
                                tile_bytes, vmem_limit)
    return out2d.reshape(N, C, H, W)


def adain_reference(image: jax.Array, style: jax.Array) -> jax.Array:
    """Pure-JAX reference matching the PyTorch module."""
    N, C, H, W = image.shape
    factor = style[:, :C].reshape(N, C, 1, 1)
    bias = style[:, C:].reshape(N, C, 1, 1)
    mean = jnp.mean(image, axis=(2, 3), keepdims=True)
    var = jnp.mean((image - mean) ** 2, axis=(2, 3), keepdims=True)
    normed = (image - mean) / jnp.sqrt(var + _EPS)
    return normed * factor + bias


if __name__ == "__main__":
    key = jax.random.PRNGKey(0)
    k1, k2, k3, k4, k5, k6 = jax.random.split(key, 6)

    # 1) Main shape (2, 4, 16, 16) f32 -> resident path, single row block.
    image = jax.random.normal(k1, (2, 4, 16, 16), dtype=jnp.float32)
    style = jax.random.normal(k2, (2, 8), dtype=jnp.float32)
    out = jax.block_until_ready(adain(image, style))
    ref = adain_reference(image, style)
    assert out.shape == image.shape
    assert jnp.allclose(out, ref, atol=5e-5, rtol=5e-5), "resident path mismatch"

    # 2) Ragged rows (10, not a multiple of 8) + multi-block resident path.
    image2 = jax.random.normal(k3, (2, 5, 16, 16), dtype=jnp.float32)
    style2 = jax.random.normal(k4, (2, 10), dtype=jnp.float32)
    out2 = jax.block_until_ready(adain(image2, style2, _max_rows_per_block=8))
    ref2 = adain_reference(image2, style2)
    assert jnp.allclose(out2, ref2, atol=5e-5, rtol=5e-5), "ragged resident mismatch"

    # 3) Plane-tiled fallback (forced), ragged plane (144) and rows (10).
    image3 = jax.random.normal(k5, (2, 5, 12, 12), dtype=jnp.float32)
    style3 = jax.random.normal(k6, (2, 10), dtype=jnp.float32)
    out3 = jax.block_until_ready(
        adain(image3, style3, _force_plane_tiled=True, _plane_tile=128))
    ref3 = adain_reference(image3, style3)
    assert jnp.allclose(out3, ref3, atol=5e-5, rtol=5e-5), "plane-tiled mismatch"

    # 4) bf16 smoke test (sublane pack = 16).
    out4 = jax.block_until_ready(adain(image.astype(jnp.bfloat16), style))
    ref4 = adain_reference(image.astype(jnp.float32), style)
    assert jnp.allclose(out4.astype(jnp.float32), ref4, atol=5e-2, rtol=5e-2), \
        "bf16 mismatch"

    print("KERNEL_OK")
</pallas_src>

<mosaic_0001>
module attributes {stable_mosaic.version = 11 : i64} {
  func.func @_resident_kernel(%arg0: i32, %arg1: memref<8x256xf32, #tpu.memory_space<vmem>>, %arg2: memref<8x1xf32, #tpu.memory_space<vmem>>, %arg3: memref<8x1xf32, #tpu.memory_space<vmem>>, %arg4: memref<8x256xf32, #tpu.memory_space<vmem>>) attributes {dimension_semantics = [#tpu.dimension_semantics<parallel>], iteration_bounds = array<i64: 1>, scalar_prefetch = 0 : i64, scratch_operands = 0 : i64, tpu.core_type = #tpu.core_type<tc>, window_params = [{transform_indices = @transform_0, window_bounds = array<i64: 8, 256>}, {pipeline_mode = #tpu.pipeline_mode<synchronous>, transform_indices = @transform_1, window_bounds = array<i64: 8, 1>}, {pipeline_mode = #tpu.pipeline_mode<synchronous>, transform_indices = @transform_2, window_bounds = array<i64: 8, 1>}, {transform_indices = @transform_3, window_bounds = array<i64: 8, 256>}]} {
    %c8_i32 = arith.constant 8 : i32
    %0 = arith.muli %arg0, %c8_i32 : i32
    %1 = tpu.assume_multiple %0, 8 : i32
    %2 = arith.index_cast %1 : i32 to index
    %c0 = arith.constant 0 : index
    %3 = vector.load %arg2[%2, %c0] : memref<8x1xf32, #tpu.memory_space<vmem>>, vector<8x1xf32>
    %4 = arith.index_cast %1 : i32 to index
    %c0_0 = arith.constant 0 : index
    %5 = vector.load %arg3[%4, %c0_0] : memref<8x1xf32, #tpu.memory_space<vmem>>, vector<8x1xf32>
    %c0_1 = arith.constant 0 : index
    %c0_2 = arith.constant 0 : index
    %6 = vector.load %arg1[%c0_1, %c0_2] : memref<8x256xf32, #tpu.memory_space<vmem>>, vector<8x256xf32>
    %cst = arith.constant dense<0.000000e+00> : vector<8xf32>
    %7 = vector.multi_reduction <add>, %6, %cst [1] : vector<8x256xf32> to vector<8xf32>
    %8 = vector.shape_cast %7 : vector<8xf32> to vector<8x1xf32>
    %cst_3 = arith.constant 3.906250e-03 : f32
    %9 = vector.broadcast %cst_3 : f32 to vector<8x1xf32>
    %10 = arith.mulf %8, %9 : vector<8x1xf32>
    %11 = vector.broadcast %10 : vector<8x1xf32> to vector<8x256xf32>
    %12 = arith.subf %6, %11 : vector<8x256xf32>
    %13 = arith.mulf %12, %12 : vector<8x256xf32>
    %cst_4 = arith.constant dense<0.000000e+00> : vector<8xf32>
    %14 = vector.multi_reduction <add>, %13, %cst_4 [1] : vector<8x256xf32> to vector<8xf32>
    %15 = vector.shape_cast %14 : vector<8xf32> to vector<8x1xf32>
    %cst_5 = arith.constant 3.906250e-03 : f32
    %16 = vector.broadcast %cst_5 : f32 to vector<8x1xf32>
    %17 = arith.mulf %15, %16 : vector<8x1xf32>
    %cst_6 = arith.constant 9.99999974E-6 : f32
    %18 = vector.broadcast %cst_6 : f32 to vector<8x1xf32>
    %19 = arith.addf %17, %18 : vector<8x1xf32>
    %20 = math.rsqrt %19 : vector<8x1xf32>
    %21 = arith.mulf %3, %20 : vector<8x1xf32>
    %22 = arith.mulf %10, %21 : vector<8x1xf32>
    %23 = arith.subf %5, %22 : vector<8x1xf32>
    %24 = vector.broadcast %21 : vector<8x1xf32> to vector<8x256xf32>
    %25 = arith.mulf %6, %24 : vector<8x256xf32>
    %26 = vector.broadcast %23 : vector<8x1xf32> to vector<8x256xf32>
    %27 = arith.addf %25, %26 : vector<8x256xf32>
    %c0_7 = arith.constant 0 : index
    %c0_8 = arith.constant 0 : index
    %28 = vector.load %arg4[%c0_7, %c0_8] : memref<8x256xf32, #tpu.memory_space<vmem>>, vector<8x256xf32>
    tpu.vector_store %arg4[%c0_7, %c0_8], %27 {strides = array<i32>} : memref<8x256xf32, #tpu.memory_space<vmem>>, vector<8x256xf32>,
    return
  }
  func.func @transform_0(%arg0: i32) -> (i32, i32) {
    %c0_i32 = arith.constant 0 : i32
    %c0_i32_0 = arith.constant 0 : i32
    return %arg0, %c0_i32 : i32, i32
  }
  func.func @transform_1(%arg0: i32) -> (i32, i32) {
    %c0_i32 = arith.constant 0 : i32
    %c0_i32_0 = arith.constant 0 : i32
    %c0_i32_1 = arith.constant 0 : i32
    return %c0_i32, %c0_i32_0 : i32, i32
  }
  func.func @transform_2(%arg0: i32) -> (i32, i32) {
    %c0_i32 = arith.constant 0 : i32
    %c0_i32_0 = arith.constant 0 : i32
    %c0_i32_1 = arith.constant 0 : i32
    return %c0_i32, %c0_i32_0 : i32, i32
  }
  func.func @transform_3(%arg0: i32) -> (i32, i32) {
    %c0_i32 = arith.constant 0 : i32
    %c0_i32_0 = arith.constant 0 : i32
    return %arg0, %c0_i32 : i32, i32
  }
}

</mosaic_0001>

<llo_original>
// kernel: tpu_custom_call.1
$region0: #{tpu_custom_call.1}
  #allocation0 [shape = 'u32[]', space=smem, size = 0x4, offset = 0x4, fixed_abs, tag = 'smem constant byte address 0x4 - core index']
  #allocation1 [shape = 'u32[144,128]{1,0:T(1,128)}', space=vmem, size = 0x12000, scoped, tag = 'internal scratch']
  %s0 = inlined_call_operand.vmem [shape: f32[8,256], index: 0, kind: input, shape index: {}]
  %s1 = inlined_call_operand.vmem [shape: f32[8,1], index: 1, kind: input, shape index: {}]
  %s2 = inlined_call_operand.vmem [shape: f32[8,1], index: 2, kind: input, shape index: {}]
  %s3 = inlined_call_operand.hbm [shape: f32[8,256], index: 3, kind: output, shape index: {}]
  %s4 = sld [smem:[#allocation0]]
  $region22: #{tpu_custom_call.1} parent=0
    _
  %s6 = ssub.s32 1, %s4
  %s7 = scalar_select 0, %s6, %s4
  $region1: #{tpu_custom_call.1} parent=0
    #allocation2 [shape = 'u8[8192]{0}', space=vmem, size = 0x2000, scoped, tag = 'output window, operand 0, single buffered']
    #allocation3 [shape = 's32[1]{0}', space=sflag, size = 0x4, scoped, tag = 'scoped memory for tpu_custom_call.1']
    %8 = vsyncpa [#allocation3], 0
    // Predicated region
    $region2: #{tpu_custom_call.1} parent=1 // pred_check
      _
    $region3: #{tpu_custom_call.1} parent=1 // pred_check_branch
      %10 = sbr.rel (0) target = $region5
    $region4: #{tpu_custom_call.1} parent=1 // pred_region
      _
    $region5: #{tpu_custom_call.1} parent=1 // pred_fallthru
      _
    // Predicated region
    $region6: #{tpu_custom_call.1} parent=1 // pred_check
      _
    $region7: #{tpu_custom_call.1} parent=1 // pred_check_branch
      %12 = sbr.rel (0) target = $region9
    $region8: #{tpu_custom_call.1} parent=1 // pred_region
      _
    $region9: #{tpu_custom_call.1} parent=1 // pred_fallthru
      _
    // Predicated region
    $region10: #{tpu_custom_call.1} parent=1 // pred_check
      _
    $region11: #{tpu_custom_call.1} parent=1 // pred_check_branch
      %14 = sbr.rel (0) target = $region13
    $region12: #{tpu_custom_call.1} parent=1 // pred_region
      _
    $region13: #{tpu_custom_call.1} parent=1 // pred_fallthru
      _
    %s15 = smul.u32 0, 8
    %s16 = scalar_lea.vmem %s1, %s15
    %v17 = vld [vmem:[%s16] sm:$0xff]
    %s18 = scalar_lea.vmem %s2, %s15
    %v19 = vld [vmem:[%s18] sm:$0xff]
    %v20 = vld [vmem:[%s0] sm:$0xff]
    %v21 = vld [vmem:[%s0 + $0x8] sm:$0xff]
    %v22 = vadd.f32 %v20, %v21
    %23 = vadd.xlane.f32.xlu0 %v22
    %v24 = vpop.xlane.xlu0 %23
    %v25 = vmul.f32 %v24, 0.00390625
    %v26 = vsub.f32 %v20, %v25
    %v27 = vsub.f32 %v21, %v25
    %v28 = vmul.f32 %v26, %v26
    %v29 = vmul.f32 %v27, %v27
    %v30 = vadd.f32 %v28, %v29
    %31 = vadd.xlane.f32.xlu0 %v30
    %v32 = vpop.xlane.xlu0 %31
    %v33 = vmul.f32 %v32, 0.00390625
    %v34 = vadd.f32 %v33, 1e-05
    %v35 = vrsqrt.pop %v34
    %v36 = vmul.f32 %v17, %v35
    %v37 = vmul.f32 %v25, %v36
    %v38 = vsub.f32 %v19, %v37
    %40 = vset.pattern.permute.xlu0 0
    %41 = vperm.xlu0 %40, %v36
    %v42 = vpop.permute.xlu0 %41
    %v44 = vmul.f32 %v20, %v42
    %v45 = vmul.f32 %v21, %v42
    %47 = vset.pattern.permute.xlu0 0
    %48 = vperm.xlu0 %47, %v38
    %v49 = vpop.permute.xlu0 %48
    %v51 = vadd.f32 %v44, %v49
    %v52 = vadd.f32 %v45, %v49
    %53 = vst [vmem:[#allocation2] sm:$0xff] %v51
    %54 = vst [vmem:[#allocation2 + $0x8] sm:$0xff] %v52
    // Predicated region
    $region14: #{tpu_custom_call.1} parent=1 // pred_check
      _
    $region15: #{tpu_custom_call.1} parent=1 // pred_check_branch
      %56 = sbr.rel (0) target = $region17
    $region16: #{tpu_custom_call.1} parent=1 // pred_region
      %s58 = ssub.s32 256, 256
      %59 = vsyncadd [#allocation3], %s58
      %s61 = sshll.u32 [#allocation2], 4
      %s62 = int_to_ptr.vmem [resolvable:$true] %s61
      %64 = dma.vmem_to_hbm [thread:$0]  %s62, 256, %s3, [#allocation3]
    $region17: #{tpu_custom_call.1} parent=1 // pred_fallthru
      _
    // Predicated region
    $region18: #{tpu_custom_call.1} parent=1 // pred_check
      _
    $region19: #{tpu_custom_call.1} parent=1 // pred_check_branch
      %66 = sbr.rel (0) target = $region21
    $region20: #{tpu_custom_call.1} parent=1 // pred_region
      %67 = dma.done [#allocation3], 256
    $region21: #{tpu_custom_call.1} parent=1 // pred_fallthru
      _
    %68 = vsyncpa [#allocation3], 1

</llo_original>
